<compile_context>
chip_gen: v7x
topology: tpu7x:2x2x1
jax: 0.10.0
libtpu: 0.0.40
codegen_flags: <defaults>
</compile_context>

<pallas_src>
import functools

import jax
import jax.numpy as jnp
from jax.experimental import pallas as pl
from jax.experimental.pallas import tpu as pltpu

# ~2 MiB per block: 2x double-buffered input + 2x output ~= 8 MiB peak VMEM.
_TARGET_BLOCK_BYTES = 2 * 1024 * 1024
_LANE_CHOICES = (1024, 512, 256, 128)


def _jump_relu_kernel(thr_ref, x_ref, o_ref):
    """Elementwise: keep strictly-greater-than-threshold values, else 0."""
    x = x_ref[...]
    t = thr_ref[0].astype(x.dtype)
    o_ref[...] = jnp.where(x > t, x, jnp.zeros_like(x))


def _launch(x2d, thresh):
    """Run the streaming kernel over a (rows, lanes) 2-D view."""
    rows, lanes = x2d.shape
    dtype = x2d.dtype
    itemsize = jnp.dtype(dtype).itemsize
    # Sublane multiple for the native dtype (f32: 8, bf16/f16: 16, int8: 32).
    sublane = max(8, 32 // itemsize)

    default_tile_rows = max(sublane, _TARGET_BLOCK_BYTES // (lanes * itemsize))
    # Full-extent block if the array is small; otherwise a ~2 MiB tile and let
    # Pallas mask the trailing partial block (no padding needed).
    tile_rows = rows if rows <= default_tile_rows else default_tile_rows
    block_bytes = tile_rows * lanes * itemsize
    grid = (pl.cdiv(rows, tile_rows),)

    return pl.pallas_call(
        _jump_relu_kernel,
        out_shape=jax.ShapeDtypeStruct((rows, lanes), dtype),
        grid_spec=pltpu.PrefetchScalarGridSpec(
            num_scalar_prefetch=0,
            grid=grid,
            in_specs=[
                # Runtime threshold scalar lives in SMEM (free under DMA-bound
                # regime, no recompile per jump value).
                pl.BlockSpec(memory_space=pltpu.MemorySpace.SMEM),
                pl.BlockSpec((tile_rows, lanes), lambda i: (i, 0)),
            ],
            out_specs=pl.BlockSpec((tile_rows, lanes), lambda i: (i, 0)),
        ),
        compiler_params=pltpu.CompilerParams(
            # Parallel axis -> megacore sharding across both TCs on v7x.
            dimension_semantics=("parallel",),
            # Double-buffered in + out plus headroom; never assume >16 MiB.
            vmem_limit_bytes=max(int(4 * block_bytes + (4 << 20)), 16 << 20),
        ),
    )(thresh, x2d)


@functools.partial(jax.jit, static_argnames=("training",))
def jump_relu(x, jump=0.0, training=False):
    """JumpReLU elementwise activation via Pallas. Any shape, native dtype."""
    orig_shape = x.shape
    n = x.size
    if n == 0:
        return x

    # training -> threshold 0.0; eval -> jump (may be a traced/learnable value).
    thresh = jnp.asarray(0.0 if training else jump, jnp.float32).reshape(1)

    # Widest lane dim that divides n -> zero-copy contiguous reshape.
    lanes = None
    for cand in _LANE_CHOICES:
        if n % cand == 0:
            lanes = cand
            break

    if lanes is not None:
        # Fast path: zero-copy reshape, cdiv grid, masked trailing block.
        rows = n // lanes
        out2d = _launch(x.reshape(rows, lanes), thresh)
        return out2d.reshape(orig_shape)

    # Ragged fallback (n % 128 != 0): pad flat array to a multiple of 128,
    # run the same kernel, slice the valid prefix back out.
    lanes = 128
    rows = pl.cdiv(n, lanes)
    padded_n = rows * lanes
    x_flat = jnp.pad(jnp.ravel(x), (0, padded_n - n))
    out2d = _launch(x_flat.reshape(rows, lanes), thresh)
    return out2d.reshape(-1)[:n].reshape(orig_shape)


if __name__ == "__main__":
    key = jax.random.PRNGKey(0)
    jump = 0.25

    # NCHW activation, as from a small conv layer (n % 1024 == 0 -> zero-copy).
    x = jax.random.normal(key, (2, 4, 16, 16), dtype=jnp.float32)

    out_eval = jump_relu(x, jump=jump, training=False)   # threshold = jump
    out_train = jump_relu(x, jump=jump, training=True)   # threshold = 0.0
    jax.block_until_ready((out_eval, out_train))

    ref_eval = jnp.where(x > jump, x, 0.0)
    ref_train = jnp.where(x > 0.0, x, 0.0)
    assert out_eval.shape == x.shape and out_eval.dtype == x.dtype
    assert jnp.array_equal(out_eval, ref_eval)
    assert jnp.array_equal(out_train, ref_train)

    # Traced threshold: no static arg, no recompile per jump value.
    out_traced = jump_relu(x, jump=jnp.float32(0.5), training=False)
    jax.block_until_ready(out_traced)
    assert jnp.array_equal(out_traced, jnp.where(x > 0.5, x, 0.0))

    # Native bf16 path (no f32 round trip inside the wrapper).
    xb = jax.random.normal(jax.random.PRNGKey(1), (2, 4, 16, 16),
                           dtype=jnp.bfloat16)
    out_b = jump_relu(xb, jump=jump, training=False)
    jax.block_until_ready(out_b)
    ref_b = jnp.where(xb > jnp.asarray(jump, jnp.bfloat16), xb,
                      jnp.zeros_like(xb))
    assert out_b.dtype == jnp.bfloat16
    assert jnp.array_equal(out_b, ref_b)

    # Multi-block grid with a masked trailing block (rows % tile_rows != 0,
    # still zero-copy -- exercises the cdiv-grid path).
    xm = jax.random.normal(jax.random.PRNGKey(3), (4100, 256),
                           dtype=jnp.float32)
    out_m = jump_relu(xm, jump=jump, training=False)
    jax.block_until_ready(out_m)
    assert jnp.array_equal(out_m, jnp.where(xm > jump, xm, 0.0))

    # Ragged size (n % 128 != 0) exercises the pad + slice fallback.
    xr = jax.random.normal(jax.random.PRNGKey(2), (3, 5, 7), dtype=jnp.float32)
    out_r = jump_relu(xr, jump=jump, training=False)
    jax.block_until_ready(out_r)
    assert jnp.array_equal(out_r, jnp.where(xr > jump, xr, 0.0))

    print("KERNEL_OK")
</pallas_src>

<mosaic_0001>
module attributes {stable_mosaic.version = 11 : i64} {
  func.func @_jump_relu_kernel(%arg0: i32, %arg1: memref<1xf32, #tpu.memory_space<smem>>, %arg2: memref<2x1024xf32, #tpu.memory_space<vmem>>, %arg3: memref<2x1024xf32, #tpu.memory_space<vmem>>) attributes {dimension_semantics = [#tpu.dimension_semantics<parallel>], iteration_bounds = array<i64: 1>, scalar_prefetch = 0 : i64, scratch_operands = 0 : i64, tpu.core_type = #tpu.core_type<tc>, window_params = [{transform_indices = @transform_0, window_bounds = array<i64: 1>}, {transform_indices = @transform_1, window_bounds = array<i64: 2, 1024>}, {transform_indices = @transform_2, window_bounds = array<i64: 2, 1024>}]} {
    %c0 = arith.constant 0 : index
    %c0_0 = arith.constant 0 : index
    %0 = vector.load %arg2[%c0, %c0_0] : memref<2x1024xf32, #tpu.memory_space<vmem>>, vector<2x1024xf32>
    %c0_1 = arith.constant 0 : index
    %1 = memref.load %arg1[%c0_1] : memref<1xf32, #tpu.memory_space<smem>>
    %2 = vector.broadcast %1 : f32 to vector<2x1024xf32>
    %3 = arith.cmpf ogt, %0, %2 : vector<2x1024xf32>
    %cst = arith.constant 0.000000e+00 : f32
    %4 = vector.broadcast %cst : f32 to vector<2x1024xf32>
    %5 = arith.select %3, %0, %4 : vector<2x1024xi1>, vector<2x1024xf32>
    %c0_2 = arith.constant 0 : index
    %c0_3 = arith.constant 0 : index
    %6 = vector.load %arg3[%c0_2, %c0_3] : memref<2x1024xf32, #tpu.memory_space<vmem>>, vector<2x1024xf32>
    tpu.vector_store %arg3[%c0_2, %c0_3], %5 {strides = array<i32>} : memref<2x1024xf32, #tpu.memory_space<vmem>>, vector<2x1024xf32>,
    return
  }
  func.func @transform_0(%arg0: i32) -> i32 {
    %c0_i32 = arith.constant 0 : i32
    %c0_i32_0 = arith.constant 0 : i32
    return %c0_i32 : i32
  }
  func.func @transform_1(%arg0: i32) -> (i32, i32) {
    %c0_i32 = arith.constant 0 : i32
    %c0_i32_0 = arith.constant 0 : i32
    return %arg0, %c0_i32 : i32, i32
  }
  func.func @transform_2(%arg0: i32) -> (i32, i32) {
    %c0_i32 = arith.constant 0 : i32
    %c0_i32_0 = arith.constant 0 : i32
    return %arg0, %c0_i32 : i32, i32
  }
}

</mosaic_0001>

<llo_original>
// kernel: jump_relu.1
$region0: #{jump_relu.1}
  #allocation0 [shape = 'u32[]', space=smem, size = 0x4, offset = 0x4, fixed_abs, tag = 'smem constant byte address 0x4 - core index']
  #allocation1 [shape = 'u32[144,128]{1,0:T(1,128)}', space=vmem, size = 0x12000, scoped, tag = 'internal scratch']
  #allocation2 [shape = 'f32[1]{0:T(128)S(6)}', space=smem, size = 0x200, scoped, tag = 'scoped memory for jump_relu.1']
  %s0 = inlined_call_operand.<no memory space> [shape: f32[1], index: 0, kind: input, shape index: {}]
  %s1 = inlined_call_operand.vmem [shape: f32[2,1024], index: 1, kind: input, shape index: {}]
  %s2 = inlined_call_operand.vmem [shape: f32[2,1024], index: 2, kind: output, shape index: {}]
  %s3 = sld [smem:[#allocation0]]
  $region18: #{jump_relu.1} parent=0
    _
  %s5 = ssub.s32 1, %s3
  %s6 = scalar_select 0, %s5, %s3
  %7 = sst [smem:[#allocation2]] %s0
  // Predicated region
  $region2: #{jump_relu.1} parent=0 // pred_check
    _
  $region3: #{jump_relu.1} parent=0 // pred_check_branch
    %9 = sbr.rel (0) target = $region5
  $region4: #{jump_relu.1} parent=0 // pred_region
    _
  $region5: #{jump_relu.1} parent=0 // pred_fallthru
    _
  // Predicated region
  $region6: #{jump_relu.1} parent=0 // pred_check
    _
  $region7: #{jump_relu.1} parent=0 // pred_check_branch
    %11 = sbr.rel (0) target = $region9
  $region8: #{jump_relu.1} parent=0 // pred_region
    _
  $region9: #{jump_relu.1} parent=0 // pred_fallthru
    _
  %v12 = vld [vmem:[%s1] sm:$0xff]
  %v13 = vld [vmem:[%s1 + $0x8] sm:$0xff]
  %s14 = sld [smem:[#allocation2]]
  %v15 = vstv %s14
  %vm16 = vcmp.gt.f32.partialorder %v12, %v15
  %vm17 = vcmp.gt.f32.partialorder %v13, %v15
  %v18 = vsel %vm16, %v12, 0.0
  %v19 = vsel %vm17, %v13, 0.0
  %20 = vst [vmem:[%s2] sm:$0xff] %v18
  %21 = vst [vmem:[%s2 + $0x8] sm:$0xff] %v19
  // Predicated region
  $region10: #{jump_relu.1} parent=0 // pred_check
    _
  $region11: #{jump_relu.1} parent=0 // pred_check_branch
    %23 = sbr.rel (0) target = $region13
  $region12: #{jump_relu.1} parent=0 // pred_region
    _
  $region13: #{jump_relu.1} parent=0 // pred_fallthru
    _
  // Predicated region
  $region14: #{jump_relu.1} parent=0 // pred_check
    _
  $region15: #{jump_relu.1} parent=0 // pred_check_branch
    %25 = sbr.rel (0) target = $region17
  $region16: #{jump_relu.1} parent=0 // pred_region
    _
  $region17: #{jump_relu.1} parent=0 // pred_fallthru
    _

</llo_original>
